<compile_context>
chip_gen: v5e
topology: v5e:2x2
jax: 0.10.0
libtpu: 0.0.40
codegen_flags: <defaults>
</compile_context>

<pallas_src>
import functools

import jax
import jax.numpy as jnp
from jax.experimental import pallas as pl
from jax.experimental.pallas import tpu as pltpu

EPS = 1e-5


def _stats_kernel(f_ref, sum_ref, ssq_ref):
    """Accumulate per-channel sum and sum-of-squares over the spatial grid axis."""
    @pl.when(pl.program_id(1) == 0)
    def _():
        sum_ref[...] = jnp.zeros_like(sum_ref)
        ssq_ref[...] = jnp.zeros_like(ssq_ref)

    x = f_ref[...].astype(jnp.float32)                    # (C, THW)
    sum_ref[...] += jnp.sum(x, axis=1, keepdims=True)     # (C, 1)
    ssq_ref[...] += jnp.sum(x * x, axis=1, keepdims=True)


def _apply_kernel(mode, f_ref, zq_ref, scale_ref, shift_ref, w_ref, b_ref, *rest):
    """out = (f*scale + shift) * conv_y(zq_up) + conv_b(zq_up) for one (batch, tile) block.

    mode:
      "up_first"   : zq_up = zq_lo @ U, then [wy;wb] @ zq_up  (cheap when Czq << 2C)
      "conv_first" : yb_lo = [wy;wb] @ zq_lo, then yb_lo @ U  (cheap when 2C <= Czq)
      "full"       : zq tile already at full resolution (non-integer scale fallback)
    """
    if mode == "full":
        (out_ref,) = rest
        u_ref = None
    else:
        u_ref, out_ref = rest

    C = out_ref.shape[0]

    x = f_ref[...].astype(jnp.float32)                    # (C, THW)
    norm_f = x * scale_ref[...] + shift_ref[...]          # per-channel GroupNorm affine

    z = zq_ref[...].astype(jnp.float32)                   # (Czq, L) or (Czq, THW)
    if mode == "up_first":
        # Nearest upsample first (Czq rows -> tiny matmul), then the fused 1x1 convs.
        z = jnp.dot(z, u_ref[...], preferred_element_type=jnp.float32)     # (Czq, THW)
    yb = jnp.dot(w_ref[...], z, preferred_element_type=jnp.float32) + b_ref[...]
    if mode == "conv_first":
        # U has exactly one '1' per column, so the bias survives the upsample exactly.
        yb = jnp.dot(yb, u_ref[...], preferred_element_type=jnp.float32)   # (2C, THW)

    out_ref[...] = (norm_f * yb[:C] + yb[C:]).astype(out_ref.dtype)


def _choose_tile_rows(H, W, r, Wz, max_lanes):
    """Largest row-tile TH (multiple of r, dividing H) giving lane-dense tiles <= max_lanes."""
    cands = []
    for th in range(r, H + 1, r):
        if H % th:
            continue
        full = th == H
        if (th * W) % 128 and not full:            # f/out tile must be 128-lane dense
            continue
        if ((th // r) * Wz) % 128 and not full:    # low-res zq tile must be too
            continue
        cands.append(th)
    fits = [th for th in cands if th * W <= max_lanes]
    return max(fits) if fits else min(cands)


def spatial_norm(f, zq, gamma, beta, wy, by, wb, bb, *, num_groups,
                 eps=EPS, max_lanes=1024):
    """f: (B, C, H, W) NCHW; zq: (B, Czq, Hz, Wz) NCHW.  Matches torch SpatialNorm forward."""
    B, C, H, W = f.shape
    _, Czq, Hz, Wz = zq.shape
    assert C % num_groups == 0, "f_channels must be divisible by num_groups"
    HW = H * W

    # The 1x1 convs commute with nearest upsampling -> work at zq's native resolution
    # whenever the scale factors are integers (the usual VAE-decoder case).
    low_res = (H % Hz == 0) and (W % Wz == 0)
    if low_res:
        r, rw = H // Hz, W // Wz
        TH = _choose_tile_rows(H, W, r, Wz, max_lanes)
        zq_flat = zq.reshape(B, Czq, Hz * Wz)
        L = (TH // r) * Wz
    else:
        # Fallback (non-integer scale, incl. downsampling): wrapper-side torch-style
        # nearest resample of zq; kernel then skips the upsample matmul.
        TH = _choose_tile_rows(H, W, 1, W, max_lanes)
        idx_h = (jnp.arange(H) * Hz) // H
        idx_w = (jnp.arange(W) * Wz) // W
        zq_flat = zq[:, :, idx_h, :][:, :, :, idx_w].reshape(B, Czq, HW)
        L = TH * W

    THW = TH * W
    n_h = H // TH
    f_flat = f.reshape(B, C, HW)

    # ---- pass 1: per-channel sum / sum-of-squares (single traversal of f) ----
    ch_sum, ch_ssq = pl.pallas_call(
        _stats_kernel,
        out_shape=(jax.ShapeDtypeStruct((B, C, 1), jnp.float32),
                   jax.ShapeDtypeStruct((B, C, 1), jnp.float32)),
        grid_spec=pltpu.PrefetchScalarGridSpec(
            num_scalar_prefetch=0,
            grid=(B, n_h),
            in_specs=[pl.BlockSpec((pl.Squeezed(), C, THW), lambda b, h: (b, 0, h))],
            out_specs=(pl.BlockSpec((pl.Squeezed(), C, 1), lambda b, h: (b, 0, 0)),
                       pl.BlockSpec((pl.Squeezed(), C, 1), lambda b, h: (b, 0, 0))),
        ),
        compiler_params=pltpu.CompilerParams(
            dimension_semantics=("parallel", "arbitrary")),
    )(f_flat)

    # ---- tiny (B*C) glue math: group statistics -> per-channel scale / shift ----
    Cg = C // num_groups
    cnt = float(Cg * HW)
    gmean = ch_sum[..., 0].reshape(B, num_groups, Cg).sum(-1) / cnt       # E[x]
    gmsq = ch_ssq[..., 0].reshape(B, num_groups, Cg).sum(-1) / cnt        # E[x^2]
    var = jnp.maximum(gmsq - gmean * gmean, 0.0)
    rstd = jax.lax.rsqrt(var + eps)
    mean_c = jnp.repeat(gmean, Cg, axis=1)                                # (B, C)
    rstd_c = jnp.repeat(rstd, Cg, axis=1)
    scale = (gamma[None, :] * rstd_c).astype(jnp.float32).reshape(B, C, 1)
    shift = (beta[None, :] - mean_c * gamma[None, :] * rstd_c).astype(jnp.float32)
    shift = shift.reshape(B, C, 1)

    # ---- fused conv weights and (low-res path) the static 0/1 upsample matrix ----
    w_cat = jnp.concatenate([wy, wb], axis=0).astype(jnp.float32)         # (2C, Czq)
    b_cat = jnp.concatenate([by, bb], axis=0).reshape(2 * C, 1).astype(jnp.float32)

    in_specs = [
        pl.BlockSpec((pl.Squeezed(), C, THW), lambda b, h: (b, 0, h)),    # f
        pl.BlockSpec((pl.Squeezed(), Czq, L), lambda b, h: (b, 0, h)),    # zq (native res)
        pl.BlockSpec((pl.Squeezed(), C, 1), lambda b, h: (b, 0, 0)),      # scale
        pl.BlockSpec((pl.Squeezed(), C, 1), lambda b, h: (b, 0, 0)),      # shift
        pl.BlockSpec((2 * C, Czq), lambda b, h: (0, 0)),                  # [wy; wb]
        pl.BlockSpec((2 * C, 1), lambda b, h: (0, 0)),                    # [by; bb]
    ]
    args = [f_flat, zq_flat, scale, shift, w_cat, b_cat]

    if low_res:
        p = jnp.arange(THW)
        src = (p // W) // r * Wz + (p % W) // rw                          # tile-invariant map
        U = (src[None, :] == jnp.arange(L)[:, None]).astype(jnp.float32)  # (L, THW), 0/1
        in_specs.append(pl.BlockSpec((L, THW), lambda b, h: (0, 0)))
        args.append(U)
        # Pick the MXU-cheaper order (conv and nearest-upsample commute).
        flops_conv_first = 2 * C * Czq * L + 2 * C * L * THW
        flops_up_first = Czq * L * THW + 2 * C * Czq * THW
        mode = "up_first" if flops_up_first < flops_conv_first else "conv_first"
    else:
        mode = "full"

    # ---- pass 2: fully parallel normalize + modulate ----
    out = pl.pallas_call(
        functools.partial(_apply_kernel, mode),
        out_shape=jax.ShapeDtypeStruct((B, C, HW), f.dtype),
        grid_spec=pltpu.PrefetchScalarGridSpec(
            num_scalar_prefetch=0,
            grid=(B, n_h),
            in_specs=in_specs,
            out_specs=pl.BlockSpec((pl.Squeezed(), C, THW), lambda b, h: (b, 0, h)),
        ),
        compiler_params=pltpu.CompilerParams(
            dimension_semantics=("parallel", "parallel")),
    )(*args)

    return out.reshape(B, C, H, W)


def spatial_norm_ref(f, zq, gamma, beta, wy, by, wb, bb, *, num_groups):
    """Pure-JAX reference matching the PyTorch module."""
    B, C, H, W = f.shape
    _, Czq, Hz, Wz = zq.shape
    Cg = C // num_groups
    xg = f.reshape(B, num_groups, Cg, H, W).astype(jnp.float32)
    mean = jnp.mean(xg, axis=(2, 3, 4), keepdims=True)
    var = jnp.mean((xg - mean) ** 2, axis=(2, 3, 4), keepdims=True)
    xn = ((xg - mean) / jnp.sqrt(var + EPS)).reshape(B, C, H, W)
    norm_f = xn * gamma[None, :, None, None] + beta[None, :, None, None]

    idx_h = (jnp.arange(H) * Hz) // H
    idx_w = (jnp.arange(W) * Wz) // W
    zq_up = zq[:, :, idx_h, :][:, :, :, idx_w]

    y = jnp.einsum("oc,bchw->bohw", wy, zq_up) + by[None, :, None, None]
    b = jnp.einsum("oc,bchw->bohw", wb, zq_up) + bb[None, :, None, None]
    return norm_f * y + b


def _make_params(key, C_F, C_ZQ):
    k_g, k_b, k_wy, k_by, k_wb, k_bb = jax.random.split(key, 6)
    gamma = 1.0 + 0.1 * jax.random.normal(k_g, (C_F,), dtype=jnp.float32)
    beta = 0.1 * jax.random.normal(k_b, (C_F,), dtype=jnp.float32)
    wy = jax.random.normal(k_wy, (C_F, C_ZQ), dtype=jnp.float32) * 0.2
    by = jax.random.normal(k_by, (C_F,), dtype=jnp.float32) * 0.1
    wb = jax.random.normal(k_wb, (C_F, C_ZQ), dtype=jnp.float32) * 0.2
    bb = jax.random.normal(k_bb, (C_F,), dtype=jnp.float32) * 0.1
    return gamma, beta, wy, by, wb, bb


def _check(key, *, B, C_F, C_ZQ, H, W, HZ, WZ, groups, max_lanes=1024):
    k_f, k_zq, k_p = jax.random.split(key, 3)
    f = jax.random.normal(k_f, (B, C_F, H, W), dtype=jnp.float32)
    zq = jax.random.normal(k_zq, (B, C_ZQ, HZ, WZ), dtype=jnp.float32)
    params = _make_params(k_p, C_F, C_ZQ)

    out = spatial_norm(f, zq, *params, num_groups=groups, max_lanes=max_lanes)
    out = jax.block_until_ready(out)
    ref = spatial_norm_ref(f, zq, *params, num_groups=groups)

    assert out.shape == (B, C_F, H, W)
    max_err = float(jnp.max(jnp.abs(out - ref)))
    assert jnp.allclose(out, ref, atol=2e-4, rtol=2e-4), f"mismatch vs reference: {max_err}"


if __name__ == "__main__":
    key = jax.random.PRNGKey(0)
    k0, k1, k2 = jax.random.split(key, 3)

    # Main case (2x nearest upsample, Czq << 2C -> "up_first"); max_lanes=512 forces two
    # spatial tiles per sample so the stats accumulation path is exercised.
    _check(k0, B=2, C_F=8, C_ZQ=4, H=32, W=32, HZ=16, WZ=16, groups=2, max_lanes=512)

    # Wide-zq case (Czq > 2C -> "conv_first" order).
    _check(k1, B=2, C_F=8, C_ZQ=32, H=16, W=16, HZ=8, WZ=8, groups=4)

    # Non-integer scale -> wrapper-side nearest resample fallback ("full" mode).
    _check(k2, B=2, C_F=8, C_ZQ=4, H=16, W=16, HZ=12, WZ=12, groups=2)

    print("KERNEL_OK")
</pallas_src>

<mosaic_0001>
module attributes {stable_mosaic.version = 11 : i64} {
  func.func @_stats_kernel(%arg0: i32, %arg1: i32, %arg2: memref<1x8x512xf32, #tpu.memory_space<vmem>>, %arg3: memref<1x8x1xf32, #tpu.memory_space<vmem>>, %arg4: memref<1x8x1xf32, #tpu.memory_space<vmem>>) attributes {dimension_semantics = [#tpu.dimension_semantics<parallel>, #tpu.dimension_semantics<arbitrary>], iteration_bounds = array<i64: 2, 2>, scalar_prefetch = 0 : i64, scratch_operands = 0 : i64, tpu.core_type = #tpu.core_type<tc>, window_params = [{transform_indices = @transform_0, window_bounds = array<i64: 1, 8, 512>}, {transform_indices = @transform_1, window_bounds = array<i64: 1, 8, 1>}, {transform_indices = @transform_2, window_bounds = array<i64: 1, 8, 1>}]} {
    %c0_i32 = arith.constant 0 : i32
    %0 = arith.cmpi eq, %arg1, %c0_i32 : i32
    %1 = arith.extui %0 : i1 to i32
    %c0_i32_0 = arith.constant 0 : i32
    %2 = arith.cmpi ne, %1, %c0_i32_0 : i32
    scf.if %2 {
      %cst_16 = arith.constant 0.000000e+00 : f32
      %22 = vector.broadcast %cst_16 : f32 to vector<8x1xf32>
      %c0_17 = arith.constant 0 : index
      %c0_18 = arith.constant 0 : index
      %c0_19 = arith.constant 0 : index
      %23 = vector.load %arg3[%c0_17, %c0_18, %c0_19] : memref<1x8x1xf32, #tpu.memory_space<vmem>>, vector<1x8x1xf32>
      %24 = vector.shape_cast %23 : vector<1x8x1xf32> to vector<8x1xf32>
      %25 = vector.shape_cast %22 : vector<8x1xf32> to vector<1x8x1xf32>
      tpu.vector_store %arg3[%c0_17, %c0_18, %c0_19], %25 {strides = array<i32>} : memref<1x8x1xf32, #tpu.memory_space<vmem>>, vector<1x8x1xf32>,
      %cst_20 = arith.constant 0.000000e+00 : f32
      %26 = vector.broadcast %cst_20 : f32 to vector<8x1xf32>
      %c0_21 = arith.constant 0 : index
      %c0_22 = arith.constant 0 : index
      %c0_23 = arith.constant 0 : index
      %27 = vector.load %arg4[%c0_21, %c0_22, %c0_23] : memref<1x8x1xf32, #tpu.memory_space<vmem>>, vector<1x8x1xf32>
      %28 = vector.shape_cast %27 : vector<1x8x1xf32> to vector<8x1xf32>
      %29 = vector.shape_cast %26 : vector<8x1xf32> to vector<1x8x1xf32>
      tpu.vector_store %arg4[%c0_21, %c0_22, %c0_23], %29 {strides = array<i32>} : memref<1x8x1xf32, #tpu.memory_space<vmem>>, vector<1x8x1xf32>,
    } else {
    }
    %c0 = arith.constant 0 : index
    %c0_1 = arith.constant 0 : index
    %c0_2 = arith.constant 0 : index
    %3 = vector.load %arg2[%c0, %c0_1, %c0_2] : memref<1x8x512xf32, #tpu.memory_space<vmem>>, vector<1x8x512xf32>
    %4 = vector.shape_cast %3 : vector<1x8x512xf32> to vector<8x512xf32>
    %c0_3 = arith.constant 0 : index
    %c0_4 = arith.constant 0 : index
    %c0_5 = arith.constant 0 : index
    %5 = vector.load %arg3[%c0_3, %c0_4, %c0_5] : memref<1x8x1xf32, #tpu.memory_space<vmem>>, vector<1x8x1xf32>
    %6 = vector.shape_cast %5 : vector<1x8x1xf32> to vector<8x1xf32>
    %cst = arith.constant dense<0.000000e+00> : vector<8xf32>
    %7 = vector.multi_reduction <add>, %4, %cst [1] : vector<8x512xf32> to vector<8xf32>
    %8 = vector.shape_cast %7 : vector<8xf32> to vector<8x1xf32>
    %9 = arith.addf %6, %8 : vector<8x1xf32>
    %c0_6 = arith.constant 0 : index
    %c0_7 = arith.constant 0 : index
    %c0_8 = arith.constant 0 : index
    %10 = vector.load %arg3[%c0_6, %c0_7, %c0_8] : memref<1x8x1xf32, #tpu.memory_space<vmem>>, vector<1x8x1xf32>
    %11 = vector.shape_cast %10 : vector<1x8x1xf32> to vector<8x1xf32>
    %12 = vector.shape_cast %9 : vector<8x1xf32> to vector<1x8x1xf32>
    tpu.vector_store %arg3[%c0_6, %c0_7, %c0_8], %12 {strides = array<i32>} : memref<1x8x1xf32, #tpu.memory_space<vmem>>, vector<1x8x1xf32>,
    %c0_9 = arith.constant 0 : index
    %c0_10 = arith.constant 0 : index
    %c0_11 = arith.constant 0 : index
    %13 = vector.load %arg4[%c0_9, %c0_10, %c0_11] : memref<1x8x1xf32, #tpu.memory_space<vmem>>, vector<1x8x1xf32>
    %14 = vector.shape_cast %13 : vector<1x8x1xf32> to vector<8x1xf32>
    %15 = arith.mulf %4, %4 : vector<8x512xf32>
    %cst_12 = arith.constant dense<0.000000e+00> : vector<8xf32>
    %16 = vector.multi_reduction <add>, %15, %cst_12 [1] : vector<8x512xf32> to vector<8xf32>
    %17 = vector.shape_cast %16 : vector<8xf32> to vector<8x1xf32>
    %18 = arith.addf %14, %17 : vector<8x1xf32>
    %c0_13 = arith.constant 0 : index
    %c0_14 = arith.constant 0 : index
    %c0_15 = arith.constant 0 : index
    %19 = vector.load %arg4[%c0_13, %c0_14, %c0_15] : memref<1x8x1xf32, #tpu.memory_space<vmem>>, vector<1x8x1xf32>
    %20 = vector.shape_cast %19 : vector<1x8x1xf32> to vector<8x1xf32>
    %21 = vector.shape_cast %18 : vector<8x1xf32> to vector<1x8x1xf32>
    tpu.vector_store %arg4[%c0_13, %c0_14, %c0_15], %21 {strides = array<i32>} : memref<1x8x1xf32, #tpu.memory_space<vmem>>, vector<1x8x1xf32>,
    return
  }
  func.func @transform_0(%arg0: i32, %arg1: i32) -> (i32, i32, i32) {
    %c0_i32 = arith.constant 0 : i32
    %c0_i32_0 = arith.constant 0 : i32
    return %arg0, %c0_i32, %arg1 : i32, i32, i32
  }
  func.func @transform_1(%arg0: i32, %arg1: i32) -> (i32, i32, i32) {
    %c0_i32 = arith.constant 0 : i32
    %c0_i32_0 = arith.constant 0 : i32
    %c0_i32_1 = arith.constant 0 : i32
    return %arg0, %c0_i32, %c0_i32_0 : i32, i32, i32
  }
  func.func @transform_2(%arg0: i32, %arg1: i32) -> (i32, i32, i32) {
    %c0_i32 = arith.constant 0 : i32
    %c0_i32_0 = arith.constant 0 : i32
    %c0_i32_1 = arith.constant 0 : i32
    return %arg0, %c0_i32, %c0_i32_0 : i32, i32, i32
  }
}

</mosaic_0001>

<llo_original>
// kernel: tpu_custom_call.1
$region0: #{tpu_custom_call.1}
  #allocation0 [shape = 'u32[]', space=smem, size = 0x4, offset = 0x4, fixed_abs, tag = 'smem constant byte address 0x4 - core index']
  #allocation1 [shape = 'u32[72,128]{1,0:T(1,128)}', space=vmem, size = 0x9000, scoped, tag = 'internal scratch']
  %s0 = inlined_call_operand.hbm [shape: f32[2,8,1024], index: 0, kind: input, shape index: {}]
  %s1 = inlined_call_operand.vmem [shape: f32[2,8,1], index: 1, kind: output, shape index: {0}]
  %s2 = inlined_call_operand.vmem [shape: f32[2,8,1], index: 2, kind: output, shape index: {1}]
  %3 = xla_tuple %s1, %s2
  %s4 = sld [smem:[#allocation0]]
  $region53: #{tpu_custom_call.1} parent=0
    _
  %s6 = ssub.s32 1, %s4
  %s7 = scalar_select 0, %s6, %s4
  $region1: #{tpu_custom_call.1} parent=0
    #allocation2 [shape = 'u8[32768]{0}', space=vmem, size = 0x8000, scoped, tag = 'input window, operand 0']
    #allocation3 [shape = 's32[2]{0}', space=sflag, size = 0x8, scoped, tag = 'scoped memory for tpu_custom_call.1']
    %8 = vsyncpa [#allocation3], 0
    %s9 = scalar_lea.sflag [#allocation3], 1
    %10 = vsyncpa %s9, 0
    loop: start=0, step=1, limit=6
    $region2: #{tpu_custom_call.1} parent=1 // loop_pre_header
      _
    $region3: #{tpu_custom_call.1} parent=1 // loop_header
      %s12 = sphi 0, %s16
      %p13 = scmp.ge.s32.totalorder %s12, 6
      %s19 = sphi 0, %s31
      %s20 = sphi 0, %s27
      %s21 = sphi 0, %s19
      %s22 = sphi 0, %s20
      %s23 = sphi 0, %s21
      %s24 = sphi 0, %s22
      %s36 = sphi 0, %s38
      %s39 = sphi 0, %s36
      %s40 = sphi 0, %s39
      %s56 = sphi 0, %s40
      %s62 = sphi 0, %s64
      %s65 = sphi 0, %s62
      %s66 = sphi 0, %s65
      %s82 = sphi 0, %s66
      %s88 = sphi 0, %s90
      %s91 = sphi 0, %s88
      %s92 = sphi 0, %s91
      %s108 = sphi 0, %s92
    $region4: #{tpu_custom_call.1} parent=1 // loop_header_branch
      %15 = sbr.rel (%p13) target = $region8
    $region5: #{tpu_custom_call.1} parent=1 // loop_body
      %s17 = ssub.s32 %s12, 1
      %s18 = ssub.s32 %s12, 2
      %s25 = sadd.s32 1, %s20
      %p26 = scmp.ge.s32.totalorder %s25, 2
      %s27 = scalar_select %p26, 0, %s25
      %s28 = sadd.s32 1, %s19
      %s29 = scalar_select %p26, %s28, %s19
      %p30 = scmp.ge.s32.totalorder %s29, 2
      %s31 = scalar_select %p30, 0, %s29
      %s32 = ssub.s32 %s19, %s31
      %s33 = ssub.s32 %s20, %s27
      %s34 = sor.u32 %s32, %s33
      %p35 = scmp.eq.s32.totalorder %s34, 0
      %s37 = sadd.s32 %s36, 1
      %s38 = scalar_select %p35, %s36, %s37
      %p41 = pneg %p35
      %p42 = scmp.eq.s32.totalorder %s12, 3
      %p43 = por %p41, %p42
      %p44 = scmp.ne.s32.totalorder %s36, %s39
      %p45 = scmp.eq.s32.totalorder %s12, 0
      %p46 = por %p44, %p45
      %p47 = scmp.ne.s32.totalorder %s36, %s39
      %p48 = scmp.eq.s32.totalorder %s17, 3
      %p49 = por %p47, %p48
      %p50 = scmp.ne.s32.totalorder %s39, %s40
      %p51 = scmp.eq.s32.totalorder %s17, 0
      %p52 = por %p50, %p51
      %p53 = scmp.ne.s32.totalorder %s39, %s40
      %p54 = scmp.eq.s32.totalorder %s18, 3
      %p55 = por %p53, %p54
      %p57 = scmp.ne.s32.totalorder %s40, %s56
      %p58 = scmp.eq.s32.totalorder %s18, 0
      %p59 = por %p57, %p58
      %s60 = ssub.s32 %s19, %s31
      %p61 = scmp.eq.s32.totalorder %s60, 0
      %s63 = sadd.s32 %s62, 1
      %s64 = scalar_select %p61, %s62, %s63
      %p67 = pneg %p61
      %p68 = scmp.eq.s32.totalorder %s12, 3
      %p69 = por %p67, %p68
      %p70 = scmp.ne.s32.totalorder %s62, %s65
      %p71 = scmp.eq.s32.totalorder %s12, 0
      %p72 = por %p70, %p71
      %p73 = scmp.ne.s32.totalorder %s62, %s65
      %p74 = scmp.eq.s32.totalorder %s17, 3
      %p75 = por %p73, %p74
      %p76 = scmp.ne.s32.totalorder %s65, %s66
      %p77 = scmp.eq.s32.totalorder %s17, 0
      %p78 = por %p76, %p77
      %p79 = scmp.ne.s32.totalorder %s65, %s66
      %p80 = scmp.eq.s32.totalorder %s18, 3
      %p81 = por %p79, %p80
      %p83 = scmp.ne.s32.totalorder %s66, %s82
      %p84 = scmp.eq.s32.totalorder %s18, 0
      %p85 = por %p83, %p84
      %s86 = ssub.s32 %s19, %s31
      %p87 = scmp.eq.s32.totalorder %s86, 0
      %s89 = sadd.s32 %s88, 1
      %s90 = scalar_select %p87, %s88, %s89
      %p93 = pneg %p87
      %p94 = scmp.eq.s32.totalorder %s12, 3
      %p95 = por %p93, %p94
      %p96 = scmp.ne.s32.totalorder %s88, %s91
      %p97 = scmp.eq.s32.totalorder %s12, 0
      %p98 = por %p96, %p97
      %p99 = scmp.ne.s32.totalorder %s88, %s91
      %p100 = scmp.eq.s32.totalorder %s17, 3
      %p101 = por %p99, %p100
      %p102 = scmp.ne.s32.totalorder %s91, %s92
      %p103 = scmp.eq.s32.totalorder %s17, 0
      %p104 = por %p102, %p103
      %p105 = scmp.ne.s32.totalorder %s91, %s92
      %p106 = scmp.eq.s32.totalorder %s18, 3
      %p107 = por %p105, %p106
      %p109 = scmp.ne.s32.totalorder %s92, %s108
      %p110 = scmp.eq.s32.totalorder %s18, 0
      %p111 = por %p109, %p110
      %p112 = scmp.le.s32.totalorder 1, %s12
      %p113 = scmp.lt.s32.totalorder %s12, 5
      %p114 = pnand %p112, %p113
      %p115 = pneg %p114
      // Predicated region
      $region9: #{tpu_custom_call.1} parent=5 // pred_check
        _
      $region10: #{tpu_custom_call.1} parent=5 // pred_check_branch
        %117 = sbr.rel (%p114) target = $region12
      $region11: #{tpu_custom_call.1} parent=5 // pred_region
        %s118 = ssub.s32 %s12, 1
      $region12: #{tpu_custom_call.1} parent=5 // pred_fallthru
        _
      %p119 = scmp.lt.s32.totalorder %s12, 4
      // Predicated region
      $region13: #{tpu_custom_call.1} parent=5 // pred_check
        %p120 = pneg %p119
      $region14: #{tpu_custom_call.1} parent=5 // pred_check_branch
        %122 = sbr.rel (%p120) target = $region16
      $region15: #{tpu_custom_call.1} parent=5 // pred_region
        // Predicated region
        $region17: #{tpu_custom_call.1} parent=15 // pred_check
          %p123 = pneg %p46
        $region18: #{tpu_custom_call.1} parent=15 // pred_check_branch
          %125 = sbr.rel (%p123) target = $region20
        $region19: #{tpu_custom_call.1} parent=15 // pred_region
          %s126 = sand.u32 %s36, 1
          %s127 = scalar_lea.sflag [#allocation3], %s126
          %s128 = sand.u32 %s36, 1
          %s129 = smul.addr %s128, 32
          %s130 = scalar_lea.vmem [#allocation2], %s129
          %s131 = smul.u32 4, %s20
          %133 = vsyncadd %s127, 0
          %s134 = smul.addr %s19, 8
          %s135 = sadd.s32 %s131, %s134
          %s136 = smul.addr %s135, 8
          %s137 = scalar_lea.hbm %s0, %s136
          %s139 = sshll.u32 %s137, 4
          %s140 = int_to_ptr.hbm [resolvable:$true] %s139
          %s141 = sshll.u32 %s130, 4
          %s142 = int_to_ptr.vmem [resolvable:$true] %s141
          %144 = dma.hbm_to_vmem [thread:$0]  %s140, 512, %s142, %s127
        $region20: #{tpu_custom_call.1} parent=15 // pred_fallthru
          _
      $region16: #{tpu_custom_call.1} parent=5 // pred_fallthru
        _
      %p145 = scmp.le.s32.totalorder 1, %s12
      %p146 = scmp.lt.s32.totalorder %s12, 5
      %p147 = pnand %p145, %p146
      %p148 = pneg %p147
      // Predicated region
      $region21: #{tpu_custom_call.1} parent=5 // pred_check
        _
      $region22: #{tpu_custom_call.1} parent=5 // pred_check_branch
        %150 = sbr.rel (%p147) target = $region24
      $region23: #{tpu_custom_call.1} parent=5 // pred_region
        %s151 = ssub.s32 %s12, 1
        %s152 = sand.u32 %s39, 1
        %s153 = scalar_lea.sflag [#allocation3], %s152
        %s154 = sand.u32 %s39, 1
        %s155 = smul.addr %s154, 32
        %s156 = scalar_lea.vmem [#allocation2], %s155
        // Predicated region
        $region25: #{tpu_custom_call.1} parent=23 // pred_check
          %p157 = pneg %p52
        $region26: #{tpu_custom_call.1} parent=23 // pred_check_branch
          %159 = sbr.rel (%p157) target = $region28
        $region27: #{tpu_custom_call.1} parent=23 // pred_region
          %161 = dma.done %s153, 512
        $region28: #{tpu_custom_call.1} parent=23 // pred_fallthru
          _
        %s162 = sand.u32 %s39, 1
        %s163 = scalar_lea.sflag [#allocation3], %s162
        %s164 = sand.u32 %s39, 1
        %s165 = smul.addr %s164, 32
        %s166 = scalar_lea.vmem [#allocation2], %s165
        %p167 = pneg %p52
        %p168 = pneg %p49
        %p169 = pneg %p78
        %p170 = pneg %p75
        %p171 = scmp.lt.s32.totalorder %s21, 1
        %s172 = scalar_select %p171, %s21, 1
        %s173 = smul.addr %s172, 8
        %s174 = scalar_lea.vmem %s1, %s173
        %p175 = pneg %p104
        %p176 = pneg %p101
        %p177 = scmp.lt.s32.totalorder %s21, 1
        %s178 = scalar_select %p177, %s21, 1
        %s179 = smul.addr %s178, 8
        %s180 = scalar_lea.vmem %s2, %s179
        %s181 = smul.u32 4, %s22
        %p182 = scmp.lt.s32.totalorder %s21, 1
        %s183 = scalar_select %p182, %s21, 1
        %s184 = smul.addr %s183, 8
        %s185 = scalar_lea.vmem %s1, %s184
        %p186 = scmp.lt.s32.totalorder %s21, 1
        %s187 = scalar_select %p186, %s21, 1
        %s188 = smul.addr %s187, 8
        %s189 = scalar_lea.vmem %s2, %s188
        %p190 = scmp.eq.s32.totalorder %s22, 0
        // Predicated region
        $region29: #{tpu_custom_call.1} parent=23 // pred_check
          %p191 = pneg %p190
        $region30: #{tpu_custom_call.1} parent=23 // pred_check_branch
          %193 = sbr.rel (%p191) target = $region32
        $region31: #{tpu_custom_call.1} parent=23 // pred_region
          %vm194 = vcmask 7168
          %195 = vst.msk [vmem:[%s185] sm:$0xff] %vm194, 0.0
          %196 = vst.msk [vmem:[%s189] sm:$0xff] %vm194, 0.0
        $region32: #{tpu_custom_call.1} parent=23 // pred_fallthru
          _
        %v197 = vld [vmem:[%s156] sm:$0xff]
        %v198 = vld [vmem:[%s156 + $0x8] sm:$0xff]
        %v199 = vld [vmem:[%s156 + $0x10] sm:$0xff]
        %v200 = vld [vmem:[%s156 + $0x18] sm:$0xff]
        %v201 = vld [vmem:[%s185] sm:$0xff]
        %v202 = vadd.f32 %v197, %v198
        %v203 = vadd.f32 %v202, %v199
        %v204 = vadd.f32 %v203, %v200
        %205 = vadd.xlane.f32.xlu0 %v204
        %v206 = vpop.xlane.xlu0 %205
        %v207 = vadd.f32 %v201, %v206
        %vm208 = vcmask 7168
        %209 = vst.msk [vmem:[%s185] sm:$0xff] %vm208, %v207
        %v210 = vld [vmem:[%s189] sm:$0xff]
        %v211 = vmul.f32 %v197, %v197
        %v212 = vmul.f32 %v198, %v198
        %v213 = vmul.f32 %v199, %v199
        %v214 = vmul.f32 %v200, %v200
        %v215 = vadd.f32 %v211, %v212
        %v216 = vadd.f32 %v215, %v213
        %v217 = vadd.f32 %v216, %v214
        %218 = vadd.xlane.f32.xlu0 %v217
        %v219 = vpop.xlane.xlu0 %218
        %v220 = vadd.f32 %v210, %v219
        %221 = vst.msk [vmem:[%s189] sm:$0xff] %vm208, %v220
        %p222 = scmp.lt.s32.totalorder %s21, 1
        %s223 = scalar_select %p222, %s21, 1
        %s224 = smul.addr %s223, 8
        %s225 = scalar_lea.vmem %s1, %s224
        %p226 = scmp.lt.s32.totalorder %s21, 1
        %s227 = scalar_select %p226, %s21, 1
        %s228 = smul.addr %s227, 8
        %s229 = scalar_lea.vmem %s2, %s228
        // Predicated region
        $region33: #{tpu_custom_call.1} parent=23 // pred_check
          %p230 = pneg %p75
        $region34: #{tpu_custom_call.1} parent=23 // pred_check_branch
          %232 = sbr.rel (%p230) target = $region36
        $region35: #{tpu_custom_call.1} parent=23 // pred_region
          _
        $region36: #{tpu_custom_call.1} parent=23 // pred_fallthru
          _
        // Predicated region
        $region37: #{tpu_custom_call.1} parent=23 // pred_check
          %p233 = pneg %p101
        $region38: #{tpu_custom_call.1} parent=23 // pred_check_branch
          %235 = sbr.rel (%p233) target = $region40
        $region39: #{tpu_custom_call.1} parent=23 // pred_region
          _
        $region40: #{tpu_custom_call.1} parent=23 // pred_fallthru
          _
      $region24: #{tpu_custom_call.1} parent=5 // pred_fallthru
        _
      %p236 = scmp.le.s32.totalorder 2, %s12
      // Predicated region
      $region41: #{tpu_custom_call.1} parent=5 // pred_check
        %p237 = pneg %p236
      $region42: #{tpu_custom_call.1} parent=5 // pred_check_branch
        %239 = sbr.rel (%p237) target = $region44
      $region43: #{tpu_custom_call.1} parent=5 // pred_region
        %s240 = ssub.s32 %s12, 2
        // Predicated region
        $region45: #{tpu_custom_call.1} parent=43 // pred_check
          %p241 = pneg %p81
        $region46: #{tpu_custom_call.1} parent=43 // pred_check_branch
          %243 = sbr.rel (%p241) target = $region48
        $region47: #{tpu_custom_call.1} parent=43 // pred_region
          %p244 = scmp.lt.s32.totalorder %s23, 1
          %s245 = scalar_select %p244, %s23, 1
          %s246 = smul.addr %s245, 8
          %s247 = scalar_lea.vmem %s1, %s246
        $region48: #{tpu_custom_call.1} parent=43 // pred_fallthru
          _
        // Predicated region
        $region49: #{tpu_custom_call.1} parent=43 // pred_check
          %p248 = pneg %p107
        $region50: #{tpu_custom_call.1} parent=43 // pred_check_branch
          %250 = sbr.rel (%p248) target = $region52
        $region51: #{tpu_custom_call.1} parent=43 // pred_region
          %p251 = scmp.lt.s32.totalorder %s23, 1
          %s252 = scalar_select %p251, %s23, 1
          %s253 = smul.addr %s252, 8
          %s254 = scalar_lea.vmem %s2, %s253
        $region52: #{tpu_custom_call.1} parent=43 // pred_fallthru
          _
      $region44: #{tpu_custom_call.1} parent=5 // pred_fallthru
        _
    $region6: #{tpu_custom_call.1} parent=1 // loop_footer
      %s16 = sadd.s32 1, %s12
    $region7: #{tpu_custom_call.1} parent=1 // loop_footer_branch
      %11 = sbr.rel target = $region3
    $region8: #{tpu_custom_call.1} parent=1 // loop_exit
      _
    %255 = vsyncpa [#allocation3], 1
    %s256 = scalar_lea.sflag [#allocation3], 1
    %257 = vsyncpa %s256, 1

</llo_original>
